<compile_context>
chip_gen: v5e
topology: v5e:2x2
jax: 0.10.0
libtpu: 0.0.40
codegen_flags: <defaults>
</compile_context>

<pallas_src>
import jax
import jax.numpy as jnp
from jax.experimental import pallas as pl
from jax.experimental.pallas import tpu as pltpu

_LANE = 128
_SUBLANE = 8


def _cls_head_kernel(x_ref, w1_ref, b1_ref, w2_ref, b2_ref, o_ref):
    # x_ref:  (TB, H)   f32  -- [CLS] rows of this batch tile
    # w1_ref: (H, H)    bf16 -- dense weight, (in, out) layout (prepared at init)
    # b1_ref: (1, H)    f32
    # w2_ref: (H, LP)   bf16 -- out_proj weight, (in, out), zero-padded to LP lanes
    # b2_ref: (1, LP)   f32
    # o_ref:  (TB, LP)  f32
    # Dropout is identity in eval mode (deterministic forward).
    x = x_ref[...].astype(jnp.bfloat16)
    h = jnp.dot(x, w1_ref[...], preferred_element_type=jnp.float32) + b1_ref[...]
    # bf16 tanh: fewer/cheaper EUP pushes and a half-size intermediate on v6e/v7x;
    # the v5e compiler upcasts internally. Well within the bf16-level tolerance.
    h = jnp.tanh(h.astype(jnp.bfloat16))
    out = jnp.dot(h, w2_ref[...], preferred_element_type=jnp.float32) + b2_ref[...]
    o_ref[...] = out.astype(o_ref.dtype)


def prepare_head_params(w_dense, b_dense, w_out, b_out):
    """One-time (init) parameter prep. PyTorch nn.Linear layout in:
         w_dense: (H, H) (out, in);  w_out: (L, H) (out, in).
       Returns MXU-ready params: (in, out) bf16 weights, f32 row biases,
       out_proj zero-padded to a lane-dense multiple of 128 labels."""
    H = w_dense.shape[1]
    L = w_out.shape[0]
    LP = max(_LANE, pl.cdiv(L, _LANE) * _LANE)
    w1 = w_dense.T.astype(jnp.bfloat16)                                   # (H, H)
    w2 = jnp.zeros((H, LP), jnp.bfloat16).at[:, :L].set(
        w_out.T.astype(jnp.bfloat16))                                     # (H, LP)
    b1 = b_dense.astype(jnp.float32).reshape(1, H)
    b2 = jnp.zeros((1, LP), jnp.float32).at[0, :L].set(b_out.astype(jnp.float32))
    return {"w1": w1, "b1": b1, "w2": w2, "b2": b2, "num_labels": L}


def _pick_batch_tile(B, H, LP, max_rows, vmem_budget):
    """Largest batch tile that fits the VMEM budget.
       Prefers a single grid step (full-B block, always legal); when tiling is
       needed, uses a multiple-of-8 tile and prefers one that divides B so the
       output store stays a full unmasked (TB, 128) vst."""
    # Resident, single-buffered weights + sublane-padded biases.
    resident = H * H * 2 + H * LP * 2 + _SUBLANE * (H + LP) * 4
    # Per-row cost: pipelined x (<=3 bufs) + out (2 bufs) + in-kernel
    # intermediates (f32 accumulator + bf16 copy of h, f32 out tile).
    per_row = 3 * H * 4 + 2 * LP * 4 + H * (4 + 2) + LP * 4
    cap = max(_SUBLANE, min(max_rows, (vmem_budget - resident) // per_row))
    if B <= cap:
        return B                                      # one grid step
    tb = max(_SUBLANE, (cap // _SUBLANE) * _SUBLANE)  # multiple of 8
    t = tb
    while t >= _SUBLANE and B % t != 0:               # prefer a divisor of B
        t -= _SUBLANE
    return t if t >= _SUBLANE else tb


def classification_head(features, params, *, max_batch_rows=1024, vmem_budget=24 << 20):
    """features: (B, S, H) float32. params: output of prepare_head_params().
       Returns logits (B, num_labels) float32."""
    w1, b1, w2, b2 = params["w1"], params["b1"], params["w2"], params["b2"]
    L = params["num_labels"]
    B, S, H = features.shape
    LP = w2.shape[1]

    tb = _pick_batch_tile(B, H, LP, max_batch_rows, vmem_budget)
    nb = pl.cdiv(B, tb)

    # [CLS] slice via the BlockSpec: view features as (B, S*H) (free, layout-
    # preserving reshape) and DMA column block 0 (= token 0) of each batch tile.
    if H % _LANE == 0:
        x_in = features.reshape(B, S * H)
    else:
        # TODO(synk): lane-granular CLS column block not expressible when H % 128 != 0;
        # fall back to a wrapper-side CLS slice.
        x_in = features[:, 0, :]

    # Strided CLS gather: deepen its pipelining only when there are enough grid
    # steps to hide it behind. Weights/biases are constant blocks -> single buffer.
    x_bufs = 3 if nb >= 3 else 2

    def _call(use_pipeline_mode):
        def spec(shape, index_map, bufs):
            if use_pipeline_mode:
                return pl.BlockSpec(shape, index_map, pipeline_mode=pl.Buffered(bufs))
            return pl.BlockSpec(shape, index_map)

        w_bufs = 1 if use_pipeline_mode else 2
        const = lambda shape: spec(shape, lambda i: (0, 0), 1)
        x_spec = spec((tb, H), lambda i: (i, 0), x_bufs)

        # VMEM budget: no artificial floor/ceiling -- request what is needed plus
        # headroom. (For very large H where even single-buffered weights exceed
        # physical VMEM, a K-tiled inner axis over H would be required.)
        # TODO(synk): add an inner "arbitrary" K-tiling axis over H for H >~ 4096.
        needed = (w_bufs * (w1.size * 2 + w2.size * 2)      # bf16 weights
                  + w_bufs * _SUBLANE * (H + LP) * 4        # biases (sublane-padded)
                  + x_bufs * tb * H * 4                     # pipelined CLS tiles
                  + 2 * tb * LP * 4                         # pipelined output tiles
                  + tb * (H * (4 + 2) + LP * 4)             # in-kernel intermediates
                  + (4 << 20))                              # headroom

        return pl.pallas_call(
            _cls_head_kernel,
            out_shape=jax.ShapeDtypeStruct((B, LP), jnp.float32),
            grid_spec=pltpu.PrefetchScalarGridSpec(
                num_scalar_prefetch=0,
                grid=(nb,),
                in_specs=[
                    x_spec,             # (TB, H) CLS rows
                    const((H, H)),      # dense weight   -- VMEM-resident
                    const((1, H)),      # dense bias
                    const((H, LP)),     # out_proj weight (lane-padded)
                    const((1, LP)),     # out_proj bias   (lane-padded)
                ],
                out_specs=pl.BlockSpec((tb, LP), lambda i: (i, 0)),
            ),
            compiler_params=pltpu.CompilerParams(
                # Megacore-shard the batch axis only when there are >=2 tiles;
                # a single latency-bound tile would otherwise pay 2x weight DMA
                # (one copy per v7x TensorCore) for no benefit.
                dimension_semantics=("parallel",) if nb >= 2 else ("arbitrary",),
                vmem_limit_bytes=int(needed),
            ),
        )(x_in, w1, b1, w2, b2)

    try:
        logits_padded = _call(True)
    except Exception:
        # TODO(synk): pipeline_mode=pl.Buffered not supported by this JAX build;
        # fall back to default double-buffered constant blocks (correct, more VMEM).
        logits_padded = _call(False)

    return logits_padded[:, :L]


if __name__ == "__main__":
    # Small but TPU-friendly config: batch=16, seq=8, hidden=128, num_labels=4.
    B, S, H, L = 16, 8, 128, 4

    key = jax.random.PRNGKey(0)
    k_feat, k_w1, k_b1, k_w2, k_b2 = jax.random.split(key, 5)

    features = jax.random.normal(k_feat, (B, S, H), dtype=jnp.float32)
    w_dense = jax.random.normal(k_w1, (H, H), dtype=jnp.float32) * 0.05   # (out, in)
    b_dense = jax.random.normal(k_b1, (H,), dtype=jnp.float32) * 0.05
    w_out = jax.random.normal(k_w2, (L, H), dtype=jnp.float32) * 0.05     # (out, in)
    b_out = jax.random.normal(k_b2, (L,), dtype=jnp.float32) * 0.05

    # One-time init-time prep (transpose + bf16 cast + label padding).
    params = prepare_head_params(w_dense, b_dense, w_out, b_out)

    # Reference in plain f32 JAX (eval-mode dropout == identity).
    x = features[:, 0, :]
    ref = jnp.tanh(x @ w_dense.T + b_dense) @ w_out.T + b_out

    # 1) Default path: single grid step (nb == 1), weights VMEM-resident.
    logits = jax.block_until_ready(classification_head(features, params))
    assert logits.shape == (B, L)
    assert logits.dtype == jnp.float32
    err = float(jnp.max(jnp.abs(logits - ref)))
    assert jnp.allclose(logits, ref, atol=2e-2, rtol=2e-2), err

    # 2) Forced multi-tile path (nb == 2): exercises the grid, pipelining,
    #    megacore semantics, and resident constant weight blocks across steps.
    logits2 = jax.block_until_ready(
        classification_head(features, params, max_batch_rows=8))
    err2 = float(jnp.max(jnp.abs(logits2 - ref)))
    assert jnp.allclose(logits2, ref, atol=2e-2, rtol=2e-2), err2

    print("KERNEL_OK")
</pallas_src>

<mosaic_0001>
module attributes {stable_mosaic.version = 11 : i64} {
  func.func @_cls_head_kernel(%arg0: i32, %arg1: memref<16x128xf32, #tpu.memory_space<vmem>>, %arg2: memref<128x128xbf16, #tpu.memory_space<vmem>>, %arg3: memref<1x128xf32, #tpu.memory_space<vmem>>, %arg4: memref<128x128xbf16, #tpu.memory_space<vmem>>, %arg5: memref<1x128xf32, #tpu.memory_space<vmem>>, %arg6: memref<16x128xf32, #tpu.memory_space<vmem>>) attributes {dimension_semantics = [#tpu.dimension_semantics<arbitrary>], iteration_bounds = array<i64: 1>, scalar_prefetch = 0 : i64, scratch_operands = 0 : i64, tpu.core_type = #tpu.core_type<tc>, window_params = [{pipeline_mode = #tpu.pipeline_mode<double_buffered>, transform_indices = @transform_0, window_bounds = array<i64: 16, 128>}, {pipeline_mode = #tpu.pipeline_mode<synchronous>, transform_indices = @transform_1, window_bounds = array<i64: 128, 128>}, {pipeline_mode = #tpu.pipeline_mode<synchronous>, transform_indices = @transform_2, window_bounds = array<i64: 1, 128>}, {pipeline_mode = #tpu.pipeline_mode<synchronous>, transform_indices = @transform_3, window_bounds = array<i64: 128, 128>}, {pipeline_mode = #tpu.pipeline_mode<synchronous>, transform_indices = @transform_4, window_bounds = array<i64: 1, 128>}, {transform_indices = @transform_5, window_bounds = array<i64: 16, 128>}]} {
    %c0 = arith.constant 0 : index
    %c0_0 = arith.constant 0 : index
    %0 = vector.load %arg1[%c0, %c0_0] : memref<16x128xf32, #tpu.memory_space<vmem>>, vector<16x128xf32>
    %1 = arith.truncf %0 : vector<16x128xf32> to vector<16x128xbf16>
    %c0_1 = arith.constant 0 : index
    %c0_2 = arith.constant 0 : index
    %2 = vector.load %arg2[%c0_1, %c0_2] : memref<128x128xbf16, #tpu.memory_space<vmem>>, vector<128x128xbf16>
    %cst = arith.constant dense<0.000000e+00> : vector<16x128xf32>
    %3 = tpu.matmul %1, %2, %cst {dimension_numbers = #tpu.dot_dimension_numbers<[1], [0], [0], [1], [0, 0, 1, 1], [], []>} : vector<16x128xbf16>, vector<128x128xbf16>, vector<16x128xf32> -> vector<16x128xf32>
    %c0_3 = arith.constant 0 : index
    %c0_4 = arith.constant 0 : index
    %4 = vector.load %arg3[%c0_3, %c0_4] : memref<1x128xf32, #tpu.memory_space<vmem>>, vector<1x128xf32>
    %5 = vector.broadcast %4 : vector<1x128xf32> to vector<16x128xf32>
    %6 = arith.addf %3, %5 : vector<16x128xf32>
    %7 = arith.truncf %6 : vector<16x128xf32> to vector<16x128xbf16>
    %8 = math.tanh %7 : vector<16x128xbf16>
    %c0_5 = arith.constant 0 : index
    %c0_6 = arith.constant 0 : index
    %9 = vector.load %arg4[%c0_5, %c0_6] : memref<128x128xbf16, #tpu.memory_space<vmem>>, vector<128x128xbf16>
    %cst_7 = arith.constant dense<0.000000e+00> : vector<16x128xf32>
    %10 = tpu.matmul %8, %9, %cst_7 {dimension_numbers = #tpu.dot_dimension_numbers<[1], [0], [0], [1], [0, 0, 1, 1], [], []>} : vector<16x128xbf16>, vector<128x128xbf16>, vector<16x128xf32> -> vector<16x128xf32>
    %c0_8 = arith.constant 0 : index
    %c0_9 = arith.constant 0 : index
    %11 = vector.load %arg5[%c0_8, %c0_9] : memref<1x128xf32, #tpu.memory_space<vmem>>, vector<1x128xf32>
    %12 = vector.broadcast %11 : vector<1x128xf32> to vector<16x128xf32>
    %13 = arith.addf %10, %12 : vector<16x128xf32>
    %c0_10 = arith.constant 0 : index
    %c0_11 = arith.constant 0 : index
    %14 = vector.load %arg6[%c0_10, %c0_11] : memref<16x128xf32, #tpu.memory_space<vmem>>, vector<16x128xf32>
    tpu.vector_store %arg6[%c0_10, %c0_11], %13 {strides = array<i32>} : memref<16x128xf32, #tpu.memory_space<vmem>>, vector<16x128xf32>,
    return
  }
  func.func @transform_0(%arg0: i32) -> (i32, i32) {
    %c0_i32 = arith.constant 0 : i32
    %c0_i32_0 = arith.constant 0 : i32
    return %arg0, %c0_i32 : i32, i32
  }
  func.func @transform_1(%arg0: i32) -> (i32, i32) {
    %c0_i32 = arith.constant 0 : i32
    %c0_i32_0 = arith.constant 0 : i32
    %c0_i32_1 = arith.constant 0 : i32
    return %c0_i32, %c0_i32_0 : i32, i32
  }
  func.func @transform_2(%arg0: i32) -> (i32, i32) {
    %c0_i32 = arith.constant 0 : i32
    %c0_i32_0 = arith.constant 0 : i32
    %c0_i32_1 = arith.constant 0 : i32
    return %c0_i32, %c0_i32_0 : i32, i32
  }
  func.func @transform_3(%arg0: i32) -> (i32, i32) {
    %c0_i32 = arith.constant 0 : i32
    %c0_i32_0 = arith.constant 0 : i32
    %c0_i32_1 = arith.constant 0 : i32
    return %c0_i32, %c0_i32_0 : i32, i32
  }
  func.func @transform_4(%arg0: i32) -> (i32, i32) {
    %c0_i32 = arith.constant 0 : i32
    %c0_i32_0 = arith.constant 0 : i32
    %c0_i32_1 = arith.constant 0 : i32
    return %c0_i32, %c0_i32_0 : i32, i32
  }
  func.func @transform_5(%arg0: i32) -> (i32, i32) {
    %c0_i32 = arith.constant 0 : i32
    %c0_i32_0 = arith.constant 0 : i32
    return %arg0, %c0_i32 : i32, i32
  }
}

module attributes {stable_mosaic.version = 11 : i64} {
  func.func @_cls_head_kernel(%arg0: i32, %arg1: memref<16x128xf32, #tpu.memory_space<vmem>>, %arg2: memref<128x128xbf16, #tpu.memory_space<vmem>>, %arg3: memref<1x128xf32, #tpu.memory_space<vmem>>, %arg4: memref<128x128xbf16, #tpu.memory_space<vmem>>, %arg5: memref<1x128xf32, #tpu.memory_space<vmem>>, %arg6: memref<16x128xf32, #tpu.memory_space<vmem>>) attributes {dimension_semantics = [#tpu.dimension_semantics<arbitrary>], iteration_bounds = array<i64: 1>, scalar_prefetch = 0 : i64, scratch_operands = 0 : i64, tpu.core_type = #tpu.core_type<tc>, window_params = [{transform_indices = @transform_0, window_bounds = array<i64: 16, 128>}, {pipeline_mode = #tpu.pipeline_mode<synchronous>, transform_indices = @transform_1, window_bounds = array<i64: 128, 128>}, {pipeline_mode = #tpu.pipeline_mode<synchronous>, transform_indices = @transform_2, window_bounds = array<i64: 1, 128>}, {pipeline_mode = #tpu.pipeline_mode<synchronous>, transform_indices = @transform_3, window_bounds = array<i64: 128, 128>}, {pipeline_mode = #tpu.pipeline_mode<synchronous>, transform_indices = @transform_4, window_bounds = array<i64: 1, 128>}, {transform_indices = @transform_5, window_bounds = array<i64: 16, 128>}]} {
    %c0 = arith.constant 0 : index
    %c0_0 = arith.constant 0 : index
    %0 = vector.load %arg1[%c0, %c0_0] : memref<16x128xf32, #tpu.memory_space<vmem>>, vector<16x128xf32>
    %1 = arith.truncf %0 : vector<16x128xf32> to vector<16x128xbf16>
    %c0_1 = arith.constant 0 : index
    %c0_2 = arith.constant 0 : index
    %2 = vector.load %arg2[%c0_1, %c0_2] : memref<128x128xbf16, #tpu.memory_space<vmem>>, vector<128x128xbf16>
    %cst = arith.constant dense<0.000000e+00> : vector<16x128xf32>
    %3 = tpu.matmul %1, %2, %cst {dimension_numbers = #tpu.dot_dimension_numbers<[1], [0], [0], [1], [0, 0, 1, 1], [], []>} : vector<16x128xbf16>, vector<128x128xbf16>, vector<16x128xf32> -> vector<16x128xf32>
    %c0_3 = arith.constant 0 : index
    %c0_4 = arith.constant 0 : index
    %4 = vector.load %arg3[%c0_3, %c0_4] : memref<1x128xf32, #tpu.memory_space<vmem>>, vector<1x128xf32>
    %5 = vector.broadcast %4 : vector<1x128xf32> to vector<16x128xf32>
    %6 = arith.addf %3, %5 : vector<16x128xf32>
    %7 = arith.truncf %6 : vector<16x128xf32> to vector<16x128xbf16>
    %8 = math.tanh %7 : vector<16x128xbf16>
    %c0_5 = arith.constant 0 : index
    %c0_6 = arith.constant 0 : index
    %9 = vector.load %arg4[%c0_5, %c0_6] : memref<128x128xbf16, #tpu.memory_space<vmem>>, vector<128x128xbf16>
    %cst_7 = arith.constant dense<0.000000e+00> : vector<16x128xf32>
    %10 = tpu.matmul %8, %9, %cst_7 {dimension_numbers = #tpu.dot_dimension_numbers<[1], [0], [0], [1], [0, 0, 1, 1], [], []>} : vector<16x128xbf16>, vector<128x128xbf16>, vector<16x128xf32> -> vector<16x128xf32>
    %c0_8 = arith.constant 0 : index
    %c0_9 = arith.constant 0 : index
    %11 = vector.load %arg5[%c0_8, %c0_9] : memref<1x128xf32, #tpu.memory_space<vmem>>, vector<1x128xf32>
    %12 = vector.broadcast %11 : vector<1x128xf32> to vector<16x128xf32>
    %13 = arith.addf %10, %12 : vector<16x128xf32>
    %c0_10 = arith.constant 0 : index
    %c0_11 = arith.constant 0 : index
    %14 = vector.load %arg6[%c0_10, %c0_11] : memref<16x128xf32, #tpu.memory_space<vmem>>, vector<16x128xf32>
    tpu.vector_store %arg6[%c0_10, %c0_11], %13 {strides = array<i32>} : memref<16x128xf32, #tpu.memory_space<vmem>>, vector<16x128xf32>,
    return
  }
  func.func @transform_0(%arg0: i32) -> (i32, i32) {
    %c0_i32 = arith.constant 0 : i32
    %c0_i32_0 = arith.constant 0 : i32
    return %arg0, %c0_i32 : i32, i32
  }
  func.func @transform_1(%arg0: i32) -> (i32, i32) {
    %c0_i32 = arith.constant 0 : i32
    %c0_i32_0 = arith.constant 0 : i32
    %c0_i32_1 = arith.constant 0 : i32
    return %c0_i32, %c0_i32_0 : i32, i32
  }
  func.func @transform_2(%arg0: i32) -> (i32, i32) {
    %c0_i32 = arith.constant 0 : i32
    %c0_i32_0 = arith.constant 0 : i32
    %c0_i32_1 = arith.constant 0 : i32
    return %c0_i32, %c0_i32_0 : i32, i32
  }
  func.func @transform_3(%arg0: i32) -> (i32, i32) {
    %c0_i32 = arith.constant 0 : i32
    %c0_i32_0 = arith.constant 0 : i32
    %c0_i32_1 = arith.constant 0 : i32
    return %c0_i32, %c0_i32_0 : i32, i32
  }
  func.func @transform_4(%arg0: i32) -> (i32, i32) {
    %c0_i32 = arith.constant 0 : i32
    %c0_i32_0 = arith.constant 0 : i32
    %c0_i32_1 = arith.constant 0 : i32
    return %c0_i32, %c0_i32_0 : i32, i32
  }
  func.func @transform_5(%arg0: i32) -> (i32, i32) {
    %c0_i32 = arith.constant 0 : i32
    %c0_i32_0 = arith.constant 0 : i32
    return %arg0, %c0_i32 : i32, i32
  }
}

</mosaic_0001>

<llo_original>
// kernel: tpu_custom_call.1
$region0: #{tpu_custom_call.1}
  #allocation0 [shape = 'u32[]', space=smem, size = 0x4, offset = 0x4, fixed_abs, tag = 'smem constant byte address 0x4 - core index']
  #allocation1 [shape = 'u32[72,128]{1,0:T(1,128)}', space=vmem, size = 0x9000, scoped, tag = 'internal scratch']
  %s0 = inlined_call_operand.hbm [shape: f32[16,1024], index: 0, kind: input, shape index: {}]
  %s1 = inlined_call_operand.hbm [shape: bf16[128,128], index: 1, kind: input, shape index: {}]
  %s2 = inlined_call_operand.vmem [shape: f32[1,128], index: 2, kind: input, shape index: {}]
  %s3 = inlined_call_operand.hbm [shape: bf16[128,128], index: 3, kind: input, shape index: {}]
  %s4 = inlined_call_operand.vmem [shape: f32[1,128], index: 4, kind: input, shape index: {}]
  %s5 = inlined_call_operand.hbm [shape: f32[16,128], index: 5, kind: output, shape index: {}]
  %s6 = sld [smem:[#allocation0]]
  $region42: #{tpu_custom_call.1} parent=0
    _
  %s8 = ssub.s32 1, %s6
  %s9 = scalar_select 0, %s8, %s6
  $region1: #{tpu_custom_call.1} parent=0
    #allocation2 [shape = 'u8[8192]{0}', space=vmem, size = 0x2000, scoped, tag = 'input window, operand 0, single buffered']
    #allocation3 [shape = 's32[1]{0}', space=sflag, size = 0x4, scoped, tag = 'scoped memory for tpu_custom_call.1']
    #allocation4 [shape = 's32[1]{0}', space=sflag, size = 0x4, scoped, tag = 'scoped memory for tpu_custom_call.1']
    #allocation5 [shape = 'u8[32768]{0}', space=vmem, size = 0x8000, scoped, tag = 'input window, operand 1, single buffered']
    #allocation6 [shape = 's32[1]{0}', space=sflag, size = 0x4, scoped, tag = 'scoped memory for tpu_custom_call.1']
    #allocation7 [shape = 'u8[32768]{0}', space=vmem, size = 0x8000, scoped, tag = 'input window, operand 3, single buffered']
    #allocation8 [shape = 'u8[8192]{0}', space=vmem, size = 0x2000, scoped, tag = 'output window, operand 0, single buffered']
    %10 = vsyncpa [#allocation3], 0
    %11 = vsyncpa [#allocation6], 0
    %12 = vsyncpa [#allocation4], 0
    // Predicated region
    $region2: #{tpu_custom_call.1} parent=1 // pred_check
      _
    $region3: #{tpu_custom_call.1} parent=1 // pred_check_branch
      %14 = sbr.rel (0) target = $region5
    $region4: #{tpu_custom_call.1} parent=1 // pred_region
      %16 = vsyncadd [#allocation3], 0
      %s17 = sshll.u32 %s0, 4
      %s18 = int_to_ptr.hbm [resolvable:$true] %s17
      %s19 = sshll.u32 [#allocation2], 4
      %s20 = int_to_ptr.vmem [resolvable:$true] %s19
      %25 = dma.hbm_to_vmem [thread:$0]  %s18, 256, %s20, [#allocation3], 1024, 128, 8
    $region5: #{tpu_custom_call.1} parent=1 // pred_fallthru
      _
    // Predicated region
    $region6: #{tpu_custom_call.1} parent=1 // pred_check
      _
    $region7: #{tpu_custom_call.1} parent=1 // pred_check_branch
      %27 = sbr.rel (0) target = $region9
    $region8: #{tpu_custom_call.1} parent=1 // pred_region
      %29 = vsyncadd [#allocation6], 0
      %s30 = sshll.u32 %s1, 4
      %s31 = int_to_ptr.hbm [resolvable:$true] %s30
      %s32 = sshll.u32 [#allocation5], 4
      %s33 = int_to_ptr.vmem [resolvable:$true] %s32
      %38 = dma.hbm_to_vmem [thread:$0]  %s31, 1024, %s33, [#allocation6], 64, 64, 4
    $region9: #{tpu_custom_call.1} parent=1 // pred_fallthru
      _
    // Predicated region
    $region10: #{tpu_custom_call.1} parent=1 // pred_check
      _
    $region11: #{tpu_custom_call.1} parent=1 // pred_check_branch
      %40 = sbr.rel (0) target = $region13
    $region12: #{tpu_custom_call.1} parent=1 // pred_region
      _
    $region13: #{tpu_custom_call.1} parent=1 // pred_fallthru
      _
    // Predicated region
    $region14: #{tpu_custom_call.1} parent=1 // pred_check
      _
    $region15: #{tpu_custom_call.1} parent=1 // pred_check_branch
      %42 = sbr.rel (0) target = $region17
    $region16: #{tpu_custom_call.1} parent=1 // pred_region
      %44 = vsyncadd [#allocation6], 0
      %s45 = sshll.u32 %s3, 4
      %s46 = int_to_ptr.hbm [resolvable:$true] %s45
      %s47 = sshll.u32 [#allocation7], 4
      %s48 = int_to_ptr.vmem [resolvable:$true] %s47
      %53 = dma.hbm_to_vmem [thread:$0]  %s46, 1024, %s48, [#allocation6], 64, 64, 4
    $region17: #{tpu_custom_call.1} parent=1 // pred_fallthru
      _
    // Predicated region
    $region18: #{tpu_custom_call.1} parent=1 // pred_check
      _
    $region19: #{tpu_custom_call.1} parent=1 // pred_check_branch
      %55 = sbr.rel (0) target = $region21
    $region20: #{tpu_custom_call.1} parent=1 // pred_region
      _
    $region21: #{tpu_custom_call.1} parent=1 // pred_fallthru
      _
    // Predicated region
    $region22: #{tpu_custom_call.1} parent=1 // pred_check
      _
    $region23: #{tpu_custom_call.1} parent=1 // pred_check_branch
      %57 = sbr.rel (0) target = $region25
    $region24: #{tpu_custom_call.1} parent=1 // pred_region
      %59 = dma.done [#allocation3], 256
    $region25: #{tpu_custom_call.1} parent=1 // pred_fallthru
      _
    // Predicated region
    $region26: #{tpu_custom_call.1} parent=1 // pred_check
      _
    $region27: #{tpu_custom_call.1} parent=1 // pred_check_branch
      %61 = sbr.rel (0) target = $region29
    $region28: #{tpu_custom_call.1} parent=1 // pred_region
      %63 = dma.done [#allocation6], 1024
    $region29: #{tpu_custom_call.1} parent=1 // pred_fallthru
      _
    // Predicated region
    $region30: #{tpu_custom_call.1} parent=1 // pred_check
      _
    $region31: #{tpu_custom_call.1} parent=1 // pred_check_branch
      %65 = sbr.rel (0) target = $region33
    $region32: #{tpu_custom_call.1} parent=1 // pred_region
      %67 = dma.done [#allocation6], 1024
    $region33: #{tpu_custom_call.1} parent=1 // pred_fallthru
      _
    %v68 = vld [vmem:[#allocation2] sm:$0xff]
    %v69 = vld [vmem:[#allocation2 + $0x8] sm:$0xff]
    %v70 = vpack.c.bf16 %v69, %v68
    %v71 = vld [vmem:[#allocation5] sm:$0xf]
    %v72 = vld [vmem:[#allocation5 + $0x4] sm:$0xf]
    %v73 = vld [vmem:[#allocation5 + $0x8] sm:$0xf]
    %v74 = vld [vmem:[#allocation5 + $0xc] sm:$0xf]
    %v75 = vld [vmem:[#allocation5 + $0x10] sm:$0xf]
    %v76 = vld [vmem:[#allocation5 + $0x14] sm:$0xf]
    %v77 = vld [vmem:[#allocation5 + $0x18] sm:$0xf]
    %v78 = vld [vmem:[#allocation5 + $0x1c] sm:$0xf]
    %v79 = vld [vmem:[#allocation5 + $0x20] sm:$0xf]
    %v80 = vld [vmem:[#allocation5 + $0x24] sm:$0xf]
    %v81 = vld [vmem:[#allocation5 + $0x28] sm:$0xf]
    %v82 = vld [vmem:[#allocation5 + $0x2c] sm:$0xf]
    %v83 = vld [vmem:[#allocation5 + $0x30] sm:$0xf]
    %v84 = vld [vmem:[#allocation5 + $0x34] sm:$0xf]
    %v85 = vld [vmem:[#allocation5 + $0x38] sm:$0xf]
    %v86 = vld [vmem:[#allocation5 + $0x3c] sm:$0xf]
    %v87 = vld [vmem:[%s2] sm:$0x1]
    %v89 = vperm.slane %v87, 0
    %v107 = vunpack.c.l.b16 %v71
    %v108 = vunpack.c.l.b16 %v72
    %v109 = vunpack.c.l.b16 %v73
    %v110 = vunpack.c.l.b16 %v74
    %v111 = vunpack.c.l.b16 %v75
    %v112 = vunpack.c.l.b16 %v76
    %v113 = vunpack.c.l.b16 %v77
    %v114 = vunpack.c.l.b16 %v78
    %v115 = vunpack.c.l.b16 %v79
    %v116 = vunpack.c.l.b16 %v80
    %v117 = vunpack.c.l.b16 %v81
    %v118 = vunpack.c.l.b16 %v82
    %v119 = vunpack.c.l.b16 %v83
    %v120 = vunpack.c.l.b16 %v84
    %v121 = vunpack.c.l.b16 %v85
    %v122 = vunpack.c.l.b16 %v86
    %v123 = vpack.c.b16 %v108, %v107
    %v124 = vpack.c.b16 %v110, %v109
    %v125 = vpack.c.b16 %v112, %v111
    %v126 = vpack.c.b16 %v114, %v113
    %v127 = vpack.c.b16 %v116, %v115
    %v128 = vpack.c.b16 %v118, %v117
    %v129 = vpack.c.b16 %v120, %v119
    %v130 = vpack.c.b16 %v122, %v121
    %139 = vmatpush.bf16.msra.mxu0 %v130
    %140 = vmatpush.bf16.msra.mxu0 %v129
    %141 = vmatpush.bf16.msra.mxu0 %v128
    %142 = vmatpush.bf16.msra.mxu0 %v127
    %143 = vmatpush.bf16.msra.mxu0 %v126
    %144 = vmatpush.bf16.msra.mxu0 %v125
    %145 = vmatpush.bf16.msra.mxu0 %v124
    %146 = vmatpush.bf16.msra.mxu0 %v123
    %147 = vmatmul.bf16.gmra.mxu0 %v70
    %v148 = vpop.f32.mrf.mxu0
    %v149 = vadd.f32 %v89, %v148
    %v150 = vpop.f32.mrf.mxu0
    %v151 = vadd.f32 %v89, %v150
    %152 = vdwg.mxu0
    %v153 = vpack.c.bf16 %v151, %v149
    %v154 = vunpack.c.l.bf16 %v153
    %v155 = vunpack.c.h.bf16 %v153
    %v156 = vtanh.pop %v154
    %v157 = vtanh.pop %v155
    %v158 = vpack.c.bf16 %v157, %v156
    %v159 = vld [vmem:[#allocation7] sm:$0xf]
    %v160 = vld [vmem:[#allocation7 + $0x4] sm:$0xf]
    %v161 = vld [vmem:[#allocation7 + $0x8] sm:$0xf]
    %v162 = vld [vmem:[#allocation7 + $0xc] sm:$0xf]
    %v163 = vld [vmem:[#allocation7 + $0x10] sm:$0xf]
    %v164 = vld [vmem:[#allocation7 + $0x14] sm:$0xf]
    %v165 = vld [vmem:[#allocation7 + $0x18] sm:$0xf]
    %v166 = vld [vmem:[#allocation7 + $0x1c] sm:$0xf]
    %v167 = vld [vmem:[#allocation7 + $0x20] sm:$0xf]
    %v168 = vld [vmem:[#allocation7 + $0x24] sm:$0xf]
    %v169 = vld [vmem:[#allocation7 + $0x28] sm:$0xf]
    %v170 = vld [vmem:[#allocation7 + $0x2c] sm:$0xf]
    %v171 = vld [vmem:[#allocation7 + $0x30] sm:$0xf]
    %v172 = vld [vmem:[#allocation7 + $0x34] sm:$0xf]
    %v173 = vld [vmem:[#allocation7 + $0x38] sm:$0xf]
    %v174 = vld [vmem:[#allocation7 + $0x3c] sm:$0xf]
    %v175 = vld [vmem:[%s4] sm:$0x1]
    %v177 = vperm.slane %v175, 0
    %v195 = vunpack.c.l.b16 %v159
    %v196 = vunpack.c.l.b16 %v160
    %v197 = vunpack.c.l.b16 %v161
    %v198 = vunpack.c.l.b16 %v162
    %v199 = vunpack.c.l.b16 %v163
    %v200 = vunpack.c.l.b16 %v164
    %v201 = vunpack.c.l.b16 %v165
    %v202 = vunpack.c.l.b16 %v166
    %v203 = vunpack.c.l.b16 %v167
    %v204 = vunpack.c.l.b16 %v168
    %v205 = vunpack.c.l.b16 %v169
    %v206 = vunpack.c.l.b16 %v170
    %v207 = vunpack.c.l.b16 %v171
    %v208 = vunpack.c.l.b16 %v172
    %v209 = vunpack.c.l.b16 %v173
    %v210 = vunpack.c.l.b16 %v174
    %v211 = vpack.c.b16 %v196, %v195
    %v212 = vpack.c.b16 %v198, %v197
    %v213 = vpack.c.b16 %v200, %v199
    %v214 = vpack.c.b16 %v202, %v201
    %v215 = vpack.c.b16 %v204, %v203
    %v216 = vpack.c.b16 %v206, %v205
    %v217 = vpack.c.b16 %v208, %v207
    %v218 = vpack.c.b16 %v210, %v209
    %227 = vmatpush.bf16.msra.mxu0 %v218
    %228 = vmatpush.bf16.msra.mxu0 %v217
    %229 = vmatpush.bf16.msra.mxu0 %v216
    %230 = vmatpush.bf16.msra.mxu0 %v215
    %231 = vmatpush.bf16.msra.mxu0 %v214
    %232 = vmatpush.bf16.msra.mxu0 %v213
    %233 = vmatpush.bf16.msra.mxu0 %v212
    %234 = vmatpush.bf16.msra.mxu0 %v211
    %235 = vmatmul.bf16.gmra.mxu0 %v158
    %v236 = vpop.f32.mrf.mxu0
    %v237 = vadd.f32 %v177, %v236
    %v238 = vpop.f32.mrf.mxu0
    %v239 = vadd.f32 %v177, %v238
    %240 = vdwg.mxu0
    %241 = vst [vmem:[#allocation8] sm:$0xff] %v237
    %242 = vst [vmem:[#allocation8 + $0x8] sm:$0xff] %v239
    // Predicated region
    $region34: #{tpu_custom_call.1} parent=1 // pred_check
      _
    $region35: #{tpu_custom_call.1} parent=1 // pred_check_branch
      %244 = sbr.rel (0) target = $region37
    $region36: #{tpu_custom_call.1} parent=1 // pred_region
      %246 = vsyncadd [#allocation4], 0
      %s247 = sshll.u32 [#allocation8], 4
      %s248 = int_to_ptr.vmem [resolvable:$true] %s247
      %s249 = sshll.u32 %s5, 4
      %s250 = int_to_ptr.hbm [resolvable:$true] %s249
      %255 = dma.vmem_to_hbm [thread:$0]  %s248, 256, %s250, [#allocation4], 128, 128, 8
    $region37: #{tpu_custom_call.1} parent=1 // pred_fallthru
      _
    // Predicated region
    $region38: #{tpu_custom_call.1} parent=1 // pred_check
      _
    $region39: #{tpu_custom_call.1} parent=1 // pred_check_branch
      %257 = sbr.rel (0) target = $region41
    $region40: #{tpu_custom_call.1} parent=1 // pred_region
      %259 = dma.done [#allocation4], 256
    $region41: #{tpu_custom_call.1} parent=1 // pred_fallthru
      _
    %260 = vsyncpa [#allocation3], 1
    %261 = vsyncpa [#allocation6], 1
    %262 = vsyncpa [#allocation4], 1

// kernel: tpu_custom_call.1
$region0: #{tpu_custom_call.1}
  #allocation0 [shape = 'u32[]', space=smem, size = 0x4, offset = 0x4, fixed_abs, tag = 'smem constant byte address 0x4 - core index']
  #allocation1 [shape = 'u32[72,128]{1,0:T(1,128)}', space=vmem, size = 0x9000, scoped, tag = 'internal scratch']
  %s0 = inlined_call_operand.hbm [shape: f32[16,1024], index: 0, kind: input, shape index: {}]
  %s1 = inlined_call_operand.hbm [shape: bf16[128,128], index: 1, kind: input, shape index: {}]
  %s2 = inlined_call_operand.vmem [shape: f32[1,128], index: 2, kind: input, shape index: {}]
  %s3 = inlined_call_operand.hbm [shape: bf16[128,128], index: 3, kind: input, shape index: {}]
  %s4 = inlined_call_operand.vmem [shape: f32[1,128], index: 4, kind: input, shape index: {}]
  %s5 = inlined_call_operand.hbm [shape: f32[16,128], index: 5, kind: output, shape index: {}]
  %s6 = sld [smem:[#allocation0]]
  $region42: #{tpu_custom_call.1} parent=0
    _
  %s8 = ssub.s32 1, %s6
  %s9 = scalar_select 0, %s8, %s6
  $region1: #{tpu_custom_call.1} parent=0
    #allocation2 [shape = 'u8[8192]{0}', space=vmem, size = 0x2000, scoped, tag = 'input window, operand 0, single buffered']
    #allocation3 [shape = 's32[1]{0}', space=sflag, size = 0x4, scoped, tag = 'scoped memory for tpu_custom_call.1']
    #allocation4 [shape = 's32[1]{0}', space=sflag, size = 0x4, scoped, tag = 'scoped memory for tpu_custom_call.1']
    #allocation5 [shape = 'u8[32768]{0}', space=vmem, size = 0x8000, scoped, tag = 'input window, operand 1, single buffered']
    #allocation6 [shape = 's32[1]{0}', space=sflag, size = 0x4, scoped, tag = 'scoped memory for tpu_custom_call.1']
    #allocation7 [shape = 'u8[32768]{0}', space=vmem, size = 0x8000, scoped, tag = 'input window, operand 3, single buffered']
    #allocation8 [shape = 'u8[8192]{0}', space=vmem, size = 0x2000, scoped, tag = 'output window, operand 0, single buffered']
    %10 = vsyncpa [#allocation3], 0
    %11 = vsyncpa [#allocation6], 0
    %12 = vsyncpa [#allocation4], 0
    // Predicated region
    $region2: #{tpu_custom_call.1} parent=1 // pred_check
      _
    $region3: #{tpu_custom_call.1} parent=1 // pred_check_branch
      %14 = sbr.rel (0) target = $region5
    $region4: #{tpu_custom_call.1} parent=1 // pred_region
      %16 = vsyncadd [#allocation3], 0
      %s17 = sshll.u32 %s0, 4
      %s18 = int_to_ptr.hbm [resolvable:$true] %s17
      %s19 = sshll.u32 [#allocation2], 4
      %s20 = int_to_ptr.vmem [resolvable:$true] %s19
      %25 = dma.hbm_to_vmem [thread:$0]  %s18, 256, %s20, [#allocation3], 1024, 128, 8
    $region5: #{tpu_custom_call.1} parent=1 // pred_fallthru
      _
    // Predicated region
    $region6: #{tpu_custom_call.1} parent=1 // pred_check
      _
    $region7: #{tpu_custom_call.1} parent=1 // pred_check_branch
      %27 = sbr.rel (0) target = $region9
    $region8: #{tpu_custom_call.1} parent=1 // pred_region
      %29 = vsyncadd [#allocation6], 0
      %s30 = sshll.u32 %s1, 4
      %s31 = int_to_ptr.hbm [resolvable:$true] %s30
      %s32 = sshll.u32 [#allocation5], 4
      %s33 = int_to_ptr.vmem [resolvable:$true] %s32
      %38 = dma.hbm_to_vmem [thread:$0]  %s31, 1024, %s33, [#allocation6], 64, 64, 4
    $region9: #{tpu_custom_call.1} parent=1 // pred_fallthru
      _
    // Predicated region
    $region10: #{tpu_custom_call.1} parent=1 // pred_check
      _
    $region11: #{tpu_custom_call.1} parent=1 // pred_check_branch
      %40 = sbr.rel (0) target = $region13
    $region12: #{tpu_custom_call.1} parent=1 // pred_region
      _
    $region13: #{tpu_custom_call.1} parent=1 // pred_fallthru
      _
    // Predicated region
    $region14: #{tpu_custom_call.1} parent=1 // pred_check
      _
    $region15: #{tpu_custom_call.1} parent=1 // pred_check_branch
      %42 = sbr.rel (0) target = $region17
    $region16: #{tpu_custom_call.1} parent=1 // pred_region
      %44 = vsyncadd [#allocation6], 0
      %s45 = sshll.u32 %s3, 4
      %s46 = int_to_ptr.hbm [resolvable:$true] %s45
      %s47 = sshll.u32 [#allocation7], 4
      %s48 = int_to_ptr.vmem [resolvable:$true] %s47
      %53 = dma.hbm_to_vmem [thread:$0]  %s46, 1024, %s48, [#allocation6], 64, 64, 4
    $region17: #{tpu_custom_call.1} parent=1 // pred_fallthru
      _
    // Predicated region
    $region18: #{tpu_custom_call.1} parent=1 // pred_check
      _
    $region19: #{tpu_custom_call.1} parent=1 // pred_check_branch
      %55 = sbr.rel (0) target = $region21
    $region20: #{tpu_custom_call.1} parent=1 // pred_region
      _
    $region21: #{tpu_custom_call.1} parent=1 // pred_fallthru
      _
    // Predicated region
    $region22: #{tpu_custom_call.1} parent=1 // pred_check
      _
    $region23: #{tpu_custom_call.1} parent=1 // pred_check_branch
      %57 = sbr.rel (0) target = $region25
    $region24: #{tpu_custom_call.1} parent=1 // pred_region
      %59 = dma.done [#allocation3], 256
    $region25: #{tpu_custom_call.1} parent=1 // pred_fallthru
      _
    // Predicated region
    $region26: #{tpu_custom_call.1} parent=1 // pred_check
      _
    $region27: #{tpu_custom_call.1} parent=1 // pred_check_branch
      %61 = sbr.rel (0) target = $region29
    $region28: #{tpu_custom_call.1} parent=1 // pred_region
      %63 = dma.done [#allocation6], 1024
    $region29: #{tpu_custom_call.1} parent=1 // pred_fallthru
      _
    // Predicated region
    $region30: #{tpu_custom_call.1} parent=1 // pred_check
      _
    $region31: #{tpu_custom_call.1} parent=1 // pred_check_branch
      %65 = sbr.rel (0) target = $region33
    $region32: #{tpu_custom_call.1} parent=1 // pred_region
      %67 = dma.done [#allocation6], 1024
    $region33: #{tpu_custom_call.1} parent=1 // pred_fallthru
      _
    %v68 = vld [vmem:[#allocation2] sm:$0xff]
    %v69 = vld [vmem:[#allocation2 + $0x8] sm:$0xff]
    %v70 = vpack.c.bf16 %v69, %v68
    %v71 = vld [vmem:[#allocation5] sm:$0xf]
    %v72 = vld [vmem:[#allocation5 + $0x4] sm:$0xf]
    %v73 = vld [vmem:[#allocation5 + $0x8] sm:$0xf]
    %v74 = vld [vmem:[#allocation5 + $0xc] sm:$0xf]
    %v75 = vld [vmem:[#allocation5 + $0x10] sm:$0xf]
    %v76 = vld [vmem:[#allocation5 + $0x14] sm:$0xf]
    %v77 = vld [vmem:[#allocation5 + $0x18] sm:$0xf]
    %v78 = vld [vmem:[#allocation5 + $0x1c] sm:$0xf]
    %v79 = vld [vmem:[#allocation5 + $0x20] sm:$0xf]
    %v80 = vld [vmem:[#allocation5 + $0x24] sm:$0xf]
    %v81 = vld [vmem:[#allocation5 + $0x28] sm:$0xf]
    %v82 = vld [vmem:[#allocation5 + $0x2c] sm:$0xf]
    %v83 = vld [vmem:[#allocation5 + $0x30] sm:$0xf]
    %v84 = vld [vmem:[#allocation5 + $0x34] sm:$0xf]
    %v85 = vld [vmem:[#allocation5 + $0x38] sm:$0xf]
    %v86 = vld [vmem:[#allocation5 + $0x3c] sm:$0xf]
    %v87 = vld [vmem:[%s2] sm:$0x1]
    %v89 = vperm.slane %v87, 0
    %v107 = vunpack.c.l.b16 %v71
    %v108 = vunpack.c.l.b16 %v72
    %v109 = vunpack.c.l.b16 %v73
    %v110 = vunpack.c.l.b16 %v74
    %v111 = vunpack.c.l.b16 %v75
    %v112 = vunpack.c.l.b16 %v76
    %v113 = vunpack.c.l.b16 %v77
    %v114 = vunpack.c.l.b16 %v78
    %v115 = vunpack.c.l.b16 %v79
    %v116 = vunpack.c.l.b16 %v80
    %v117 = vunpack.c.l.b16 %v81
    %v118 = vunpack.c.l.b16 %v82
    %v119 = vunpack.c.l.b16 %v83
    %v120 = vunpack.c.l.b16 %v84
    %v121 = vunpack.c.l.b16 %v85
    %v122 = vunpack.c.l.b16 %v86
    %v123 = vpack.c.b16 %v108, %v107
    %v124 = vpack.c.b16 %v110, %v109
    %v125 = vpack.c.b16 %v112, %v111
    %v126 = vpack.c.b16 %v114, %v113
    %v127 = vpack.c.b16 %v116, %v115
    %v128 = vpack.c.b16 %v118, %v117
    %v129 = vpack.c.b16 %v120, %v119
    %v130 = vpack.c.b16 %v122, %v121
    %139 = vmatpush.bf16.msra.mxu0 %v130
    %140 = vmatpush.bf16.msra.mxu0 %v129
    %141 = vmatpush.bf16.msra.mxu0 %v128
    %142 = vmatpush.bf16.msra.mxu0 %v127
    %143 = vmatpush.bf16.msra.mxu0 %v126
    %144 = vmatpush.bf16.msra.mxu0 %v125
    %145 = vmatpush.bf16.msra.mxu0 %v124
    %146 = vmatpush.bf16.msra.mxu0 %v123
    %147 = vmatmul.bf16.gmra.mxu0 %v70
    %v148 = vpop.f32.mrf.mxu0
    %v149 = vadd.f32 %v89, %v148
    %v150 = vpop.f32.mrf.mxu0
    %v151 = vadd.f32 %v89, %v150
    %152 = vdwg.mxu0
    %v153 = vpack.c.bf16 %v151, %v149
    %v154 = vunpack.c.l.bf16 %v153
    %v155 = vunpack.c.h.bf16 %v153
    %v156 = vtanh.pop %v154
    %v157 = vtanh.pop %v155
    %v158 = vpack.c.bf16 %v157, %v156
    %v159 = vld [vmem:[#allocation7] sm:$0xf]
    %v160 = vld [vmem:[#allocation7 + $0x4] sm:$0xf]
    %v161 = vld [vmem:[#allocation7 + $0x8] sm:$0xf]
    %v162 = vld [vmem:[#allocation7 + $0xc] sm:$0xf]
    %v163 = vld [vmem:[#allocation7 + $0x10] sm:$0xf]
    %v164 = vld [vmem:[#allocation7 + $0x14] sm:$0xf]
    %v165 = vld [vmem:[#allocation7 + $0x18] sm:$0xf]
    %v166 = vld [vmem:[#allocation7 + $0x1c] sm:$0xf]
    %v167 = vld [vmem:[#allocation7 + $0x20] sm:$0xf]
    %v168 = vld [vmem:[#allocation7 + $0x24] sm:$0xf]
    %v169 = vld [vmem:[#allocation7 + $0x28] sm:$0xf]
    %v170 = vld [vmem:[#allocation7 + $0x2c] sm:$0xf]
    %v171 = vld [vmem:[#allocation7 + $0x30] sm:$0xf]
    %v172 = vld [vmem:[#allocation7 + $0x34] sm:$0xf]
    %v173 = vld [vmem:[#allocation7 + $0x38] sm:$0xf]
    %v174 = vld [vmem:[#allocation7 + $0x3c] sm:$0xf]
    %v175 = vld [vmem:[%s4] sm:$0x1]
    %v177 = vperm.slane %v175, 0
    %v195 = vunpack.c.l.b16 %v159
    %v196 = vunpack.c.l.b16 %v160
    %v197 = vunpack.c.l.b16 %v161
    %v198 = vunpack.c.l.b16 %v162
    %v199 = vunpack.c.l.b16 %v163
    %v200 = vunpack.c.l.b16 %v164
    %v201 = vunpack.c.l.b16 %v165
    %v202 = vunpack.c.l.b16 %v166
    %v203 = vunpack.c.l.b16 %v167
    %v204 = vunpack.c.l.b16 %v168
    %v205 = vunpack.c.l.b16 %v169
    %v206 = vunpack.c.l.b16 %v170
    %v207 = vunpack.c.l.b16 %v171
    %v208 = vunpack.c.l.b16 %v172
    %v209 = vunpack.c.l.b16 %v173
    %v210 = vunpack.c.l.b16 %v174
    %v211 = vpack.c.b16 %v196, %v195
    %v212 = vpack.c.b16 %v198, %v197
    %v213 = vpack.c.b16 %v200, %v199
    %v214 = vpack.c.b16 %v202, %v201
    %v215 = vpack.c.b16 %v204, %v203
    %v216 = vpack.c.b16 %v206, %v205
    %v217 = vpack.c.b16 %v208, %v207
    %v218 = vpack.c.b16 %v210, %v209
    %227 = vmatpush.bf16.msra.mxu0 %v218
    %228 = vmatpush.bf16.msra.mxu0 %v217
    %229 = vmatpush.bf16.msra.mxu0 %v216
    %230 = vmatpush.bf16.msra.mxu0 %v215
    %231 = vmatpush.bf16.msra.mxu0 %v214
    %232 = vmatpush.bf16.msra.mxu0 %v213
    %233 = vmatpush.bf16.msra.mxu0 %v212
    %234 = vmatpush.bf16.msra.mxu0 %v211
    %235 = vmatmul.bf16.gmra.mxu0 %v158
    %v236 = vpop.f32.mrf.mxu0
    %v237 = vadd.f32 %v177, %v236
    %v238 = vpop.f32.mrf.mxu0
    %v239 = vadd.f32 %v177, %v238
    %240 = vdwg.mxu0
    %241 = vst [vmem:[#allocation8] sm:$0xff] %v237
    %242 = vst [vmem:[#allocation8 + $0x8] sm:$0xff] %v239
    // Predicated region
    $region34: #{tpu_custom_call.1} parent=1 // pred_check
      _
    $region35: #{tpu_custom_call.1} parent=1 // pred_check_branch
      %244 = sbr.rel (0) target = $region37
    $region36: #{tpu_custom_call.1} parent=1 // pred_region
      %246 = vsyncadd [#allocation4], 0
      %s247 = sshll.u32 [#allocation8], 4
      %s248 = int_to_ptr.vmem [resolvable:$true] %s247
      %s249 = sshll.u32 %s5, 4
      %s250 = int_to_ptr.hbm [resolvable:$true] %s249
      %255 = dma.vmem_to_hbm [thread:$0]  %s248, 256, %s250, [#allocation4], 128, 128, 8
    $region37: #{tpu_custom_call.1} parent=1 // pred_fallthru
      _
    // Predicated region
    $region38: #{tpu_custom_call.1} parent=1 // pred_check
      _
    $region39: #{tpu_custom_call.1} parent=1 // pred_check_branch
      %257 = sbr.rel (0) target = $region41
    $region40: #{tpu_custom_call.1} parent=1 // pred_region
      %259 = dma.done [#allocation4], 256
    $region41: #{tpu_custom_call.1} parent=1 // pred_fallthru
      _
    %260 = vsyncpa [#allocation3], 1
    %261 = vsyncpa [#allocation6], 1
    %262 = vsyncpa [#allocation4], 1

</llo_original>
